<compile_context>
chip_gen: v6e
topology: v6e:2x2x1
jax: 0.10.0
libtpu: 0.0.40
codegen_flags: <defaults>
</compile_context>

<pallas_src>
import jax
import jax.numpy as jnp
from jax.experimental import pallas as pl
from jax.experimental.pallas import tpu as pltpu


def _leaky_relu(x, slope=0.2):
    return jnp.where(x >= 0, x, slope * x)


def _round_up(n, m):
    return ((n + m - 1) // m) * m


def nnet_kernel(x_ref, w0_ref, b0_ref, w1_ref, b1_ref, w2_ref, b2_ref, o_ref):
    # One (packed) batch tile per grid step; all three matmuls + activations fused.
    x = x_ref[...]                                                       # [TB, F*g]
    h0 = jnp.dot(x, w0_ref[...], preferred_element_type=jnp.float32)    # [TB, 60*g]
    h0 = _leaky_relu(h0 + b0_ref[...])
    h1 = jnp.dot(h0, w1_ref[...], preferred_element_type=jnp.float32)   # [TB, 10*g]
    h1 = _leaky_relu(h1 + b1_ref[...])
    out = jnp.dot(h1, w2_ref[...], preferred_element_type=jnp.float32)  # [TB, g]
    # b2 lives in SMEM; scalar add (same bias for every packed output column),
    # then a single full-tile vector store.
    o_ref[...] = out + b2_ref[0, 0]


def nnet_forward(x, params, *, groups=4, max_tile_rows=2048):
    """Fused 3-layer MLP forward.  `groups` packs that many batch rows per
    MXU row via block-diagonal weights (4 for v6e/v7x, 2 is enough for v5e)."""
    w0, b0, w1, b1, w2, b2 = params
    B, F = x.shape
    n_h0 = w0.shape[1]
    n_h1 = w1.shape[1]
    n_out = w2.shape[1]          # == 1

    g = max(1, int(groups))

    # --- choose packed-row tile -------------------------------------------
    packed_rows = -(-B // g)                       # rows after g-way packing
    if packed_rows <= 16:
        tile = _round_up(packed_rows, 8)           # single small grid step
    else:
        # Aim for >= 2 grid steps (v7x megacore), sublane-aligned, capped so
        # per-step VMEM stays a few MiB on every generation.
        half = (packed_rows + 1) // 2
        tile = max(8, min(max_tile_rows, _round_up(half, 8)))
    packed_pad = _round_up(packed_rows, tile)
    total_rows = packed_pad * g
    grid = (packed_pad // tile,)

    # --- pack inputs / weights --------------------------------------------
    if total_rows != B:
        x = jnp.pad(x, ((0, total_rows - B), (0, 0)))   # zero rows, sliced off below
    xp = x.reshape(packed_pad, F * g)                    # row-major pack (free)

    eye = jnp.eye(g, dtype=x.dtype)
    w0p = jnp.kron(eye, w0)                              # [F*g,   n_h0*g] block-diag
    w1p = jnp.kron(eye, w1)                              # [n_h0*g, n_h1*g]
    w2p = jnp.kron(eye, w2)                              # [n_h1*g, n_out*g]
    b0p = jnp.tile(b0, (1, g))                           # [1, n_h0*g]
    b1p = jnp.tile(b1, (1, g))                           # [1, n_h1*g]
    b2s = b2.reshape(1, 1).astype(jnp.float32)           # SMEM scalar

    fg, h0g, h1g, og = F * g, n_h0 * g, n_h1 * g, n_out * g

    flops = 2 * packed_pad * (fg * h0g + h0g * h1g + h1g * og)
    bytes_accessed = 4 * (
        packed_pad * fg + packed_pad * og
        + fg * h0g + h0g
        + h0g * h1g + h1g
        + h1g * og + 1
    )

    out = pl.pallas_call(
        nnet_kernel,
        out_shape=jax.ShapeDtypeStruct((packed_pad, og), jnp.float32),
        grid=grid,
        in_specs=[
            # x: tiled along (packed) batch -> pipelined / double-buffered.
            pl.BlockSpec((tile, fg), lambda i: (i, 0)),
            # Weights & vector biases: same block every step -> VMEM-resident.
            pl.BlockSpec((fg, h0g), lambda i: (0, 0)),
            pl.BlockSpec((1, h0g), lambda i: (0, 0)),
            pl.BlockSpec((h0g, h1g), lambda i: (0, 0)),
            pl.BlockSpec((1, h1g), lambda i: (0, 0)),
            pl.BlockSpec((h1g, og), lambda i: (0, 0)),
            # Scalar output bias lives in SMEM.
            pl.BlockSpec(memory_space=pltpu.MemorySpace.SMEM),
        ],
        out_specs=pl.BlockSpec((tile, og), lambda i: (i, 0)),
        compiler_params=pltpu.CompilerParams(
            dimension_semantics=("parallel",),
        ),
        cost_estimate=pl.CostEstimate(
            flops=flops, transcendentals=0, bytes_accessed=bytes_accessed
        ),
    )(xp, w0p, b0p, w1p, b1p, w2p, b2s)

    # Unpack [packed_pad, g] -> [total_rows, 1] and drop padded rows.
    return out.reshape(total_rows, n_out)[:B]


def init_params(key, size):
    # Deterministic synthetic init (shapes match the PyTorch module).
    k0, k1, k2, k3, k4, k5 = jax.random.split(key, 6)
    w0 = jax.random.normal(k0, (size, 60), jnp.float32) * 0.1   # Linear(size, 60)
    b0 = jax.random.normal(k1, (1, 60), jnp.float32) * 0.1
    w1 = jax.random.normal(k2, (60, 10), jnp.float32) * 0.1     # Linear(60, 10)
    b1 = jax.random.normal(k3, (1, 10), jnp.float32) * 0.1
    w2 = jax.random.normal(k4, (10, 1), jnp.float32) * 0.1      # Linear(10, 1)
    b2 = jax.random.normal(k5, (1, 1), jnp.float32) * 0.1
    return (w0, b0, w1, b1, w2, b2)


def nnet_reference(x, params):
    # Pure-JAX reference for correctness checking.
    w0, b0, w1, b1, w2, b2 = params
    h0 = _leaky_relu(x @ w0 + b0)
    h1 = _leaky_relu(h0 @ w1 + b1)
    return h1 @ w2 + b2


if __name__ == "__main__":
    key = jax.random.PRNGKey(0)
    kx, kx2, kp = jax.random.split(key, 3)

    size = 20                      # n_features after the PCA/column drops

    # Small case: single grid step (2 packed rows padded to 8).
    batch = 8
    x = jax.random.normal(kx, (batch, size), jnp.float32)
    params = init_params(kp, size)

    out = nnet_forward(x, params)
    out = jax.block_until_ready(out)
    ref = nnet_reference(x, params)
    assert out.shape == (batch, 1), out.shape
    assert jnp.allclose(out, ref, atol=1e-4, rtol=1e-4), "mismatch vs reference (small)"

    # Larger case: exercises g-way packing, batch padding, and a 2-step
    # parallel grid (300 rows -> 75 packed rows -> 2 tiles of 40).
    batch2 = 300
    x2 = jax.random.normal(kx2, (batch2, size), jnp.float32)
    out2 = nnet_forward(x2, params)
    out2 = jax.block_until_ready(out2)
    ref2 = nnet_reference(x2, params)
    assert out2.shape == (batch2, 1), out2.shape
    assert jnp.allclose(out2, ref2, atol=1e-4, rtol=1e-4), "mismatch vs reference (tiled)"

    # v5e-friendly variant (g=2 matches its 128-wide MXU); same numerics.
    out3 = nnet_forward(x2, params, groups=2)
    out3 = jax.block_until_ready(out3)
    assert jnp.allclose(out3, ref2, atol=1e-4, rtol=1e-4), "mismatch vs reference (g=2)"

    print("KERNEL_OK")
</pallas_src>

<mosaic_0001>
module attributes {stable_mosaic.version = 11 : i64} {
  func.func @nnet_kernel(%arg0: i32, %arg1: memref<8x80xf32, #tpu.memory_space<vmem>>, %arg2: memref<80x240xf32, #tpu.memory_space<vmem>>, %arg3: memref<1x240xf32, #tpu.memory_space<vmem>>, %arg4: memref<240x40xf32, #tpu.memory_space<vmem>>, %arg5: memref<1x40xf32, #tpu.memory_space<vmem>>, %arg6: memref<40x4xf32, #tpu.memory_space<vmem>>, %arg7: memref<1x1xf32, #tpu.memory_space<smem>>, %arg8: memref<8x4xf32, #tpu.memory_space<vmem>>) attributes {dimension_semantics = [#tpu.dimension_semantics<parallel>], iteration_bounds = array<i64: 1>, scalar_prefetch = 0 : i64, scratch_operands = 0 : i64, tpu.core_type = #tpu.core_type<tc>, window_params = [{transform_indices = @transform_0, window_bounds = array<i64: 8, 80>}, {pipeline_mode = #tpu.pipeline_mode<synchronous>, transform_indices = @transform_1, window_bounds = array<i64: 80, 240>}, {pipeline_mode = #tpu.pipeline_mode<synchronous>, transform_indices = @transform_2, window_bounds = array<i64: 1, 240>}, {pipeline_mode = #tpu.pipeline_mode<synchronous>, transform_indices = @transform_3, window_bounds = array<i64: 240, 40>}, {pipeline_mode = #tpu.pipeline_mode<synchronous>, transform_indices = @transform_4, window_bounds = array<i64: 1, 40>}, {pipeline_mode = #tpu.pipeline_mode<synchronous>, transform_indices = @transform_5, window_bounds = array<i64: 40, 4>}, {transform_indices = @transform_6, window_bounds = array<i64: 1, 1>}, {transform_indices = @transform_7, window_bounds = array<i64: 8, 4>}]} {
    %c0 = arith.constant 0 : index
    %c0_0 = arith.constant 0 : index
    %0 = vector.load %arg1[%c0, %c0_0] : memref<8x80xf32, #tpu.memory_space<vmem>>, vector<8x80xf32>
    %c0_1 = arith.constant 0 : index
    %c0_2 = arith.constant 0 : index
    %1 = vector.load %arg2[%c0_1, %c0_2] : memref<80x240xf32, #tpu.memory_space<vmem>>, vector<80x240xf32>
    %cst = arith.constant dense<0.000000e+00> : vector<8x240xf32>
    %2 = tpu.matmul %0, %1, %cst {dimension_numbers = #tpu.dot_dimension_numbers<[1], [0], [0], [1], [0, 0, 1, 1], [], []>} : vector<8x80xf32>, vector<80x240xf32>, vector<8x240xf32> -> vector<8x240xf32>
    %c0_3 = arith.constant 0 : index
    %c0_4 = arith.constant 0 : index
    %3 = vector.load %arg3[%c0_3, %c0_4] : memref<1x240xf32, #tpu.memory_space<vmem>>, vector<1x240xf32>
    %4 = vector.broadcast %3 : vector<1x240xf32> to vector<8x240xf32>
    %5 = arith.addf %2, %4 : vector<8x240xf32>
    %cst_5 = arith.constant 0.000000e+00 : f32
    %6 = vector.broadcast %cst_5 : f32 to vector<8x240xf32>
    %7 = arith.cmpf oge, %5, %6 : vector<8x240xf32>
    %cst_6 = arith.constant 2.000000e-01 : f32
    %8 = vector.broadcast %cst_6 : f32 to vector<8x240xf32>
    %9 = arith.mulf %8, %5 : vector<8x240xf32>
    %10 = arith.select %7, %5, %9 : vector<8x240xi1>, vector<8x240xf32>
    %c0_7 = arith.constant 0 : index
    %c0_8 = arith.constant 0 : index
    %11 = vector.load %arg4[%c0_7, %c0_8] : memref<240x40xf32, #tpu.memory_space<vmem>>, vector<240x40xf32>
    %cst_9 = arith.constant dense<0.000000e+00> : vector<8x40xf32>
    %12 = tpu.matmul %10, %11, %cst_9 {dimension_numbers = #tpu.dot_dimension_numbers<[1], [0], [0], [1], [0, 0, 1, 1], [], []>} : vector<8x240xf32>, vector<240x40xf32>, vector<8x40xf32> -> vector<8x40xf32>
    %c0_10 = arith.constant 0 : index
    %c0_11 = arith.constant 0 : index
    %13 = vector.load %arg5[%c0_10, %c0_11] : memref<1x40xf32, #tpu.memory_space<vmem>>, vector<1x40xf32>
    %14 = vector.broadcast %13 : vector<1x40xf32> to vector<8x40xf32>
    %15 = arith.addf %12, %14 : vector<8x40xf32>
    %cst_12 = arith.constant 0.000000e+00 : f32
    %16 = vector.broadcast %cst_12 : f32 to vector<8x40xf32>
    %17 = arith.cmpf oge, %15, %16 : vector<8x40xf32>
    %cst_13 = arith.constant 2.000000e-01 : f32
    %18 = vector.broadcast %cst_13 : f32 to vector<8x40xf32>
    %19 = arith.mulf %18, %15 : vector<8x40xf32>
    %20 = arith.select %17, %15, %19 : vector<8x40xi1>, vector<8x40xf32>
    %c0_14 = arith.constant 0 : index
    %c0_15 = arith.constant 0 : index
    %21 = vector.load %arg6[%c0_14, %c0_15] : memref<40x4xf32, #tpu.memory_space<vmem>>, vector<40x4xf32>
    %cst_16 = arith.constant dense<0.000000e+00> : vector<8x4xf32>
    %22 = tpu.matmul %20, %21, %cst_16 {dimension_numbers = #tpu.dot_dimension_numbers<[1], [0], [0], [1], [0, 0, 1, 1], [], []>} : vector<8x40xf32>, vector<40x4xf32>, vector<8x4xf32> -> vector<8x4xf32>
    %c0_17 = arith.constant 0 : index
    %c0_18 = arith.constant 0 : index
    %23 = memref.load %arg7[%c0_17, %c0_18] : memref<1x1xf32, #tpu.memory_space<smem>>
    %24 = vector.broadcast %23 : f32 to vector<8x4xf32>
    %25 = arith.addf %22, %24 : vector<8x4xf32>
    %c0_19 = arith.constant 0 : index
    %c0_20 = arith.constant 0 : index
    %26 = vector.load %arg8[%c0_19, %c0_20] : memref<8x4xf32, #tpu.memory_space<vmem>>, vector<8x4xf32>
    tpu.vector_store %arg8[%c0_19, %c0_20], %25 {strides = array<i32>} : memref<8x4xf32, #tpu.memory_space<vmem>>, vector<8x4xf32>,
    return
  }
  func.func @transform_0(%arg0: i32) -> (i32, i32) {
    %c0_i32 = arith.constant 0 : i32
    %c0_i32_0 = arith.constant 0 : i32
    return %arg0, %c0_i32 : i32, i32
  }
  func.func @transform_1(%arg0: i32) -> (i32, i32) {
    %c0_i32 = arith.constant 0 : i32
    %c0_i32_0 = arith.constant 0 : i32
    %c0_i32_1 = arith.constant 0 : i32
    return %c0_i32, %c0_i32_0 : i32, i32
  }
  func.func @transform_2(%arg0: i32) -> (i32, i32) {
    %c0_i32 = arith.constant 0 : i32
    %c0_i32_0 = arith.constant 0 : i32
    %c0_i32_1 = arith.constant 0 : i32
    return %c0_i32, %c0_i32_0 : i32, i32
  }
  func.func @transform_3(%arg0: i32) -> (i32, i32) {
    %c0_i32 = arith.constant 0 : i32
    %c0_i32_0 = arith.constant 0 : i32
    %c0_i32_1 = arith.constant 0 : i32
    return %c0_i32, %c0_i32_0 : i32, i32
  }
  func.func @transform_4(%arg0: i32) -> (i32, i32) {
    %c0_i32 = arith.constant 0 : i32
    %c0_i32_0 = arith.constant 0 : i32
    %c0_i32_1 = arith.constant 0 : i32
    return %c0_i32, %c0_i32_0 : i32, i32
  }
  func.func @transform_5(%arg0: i32) -> (i32, i32) {
    %c0_i32 = arith.constant 0 : i32
    %c0_i32_0 = arith.constant 0 : i32
    %c0_i32_1 = arith.constant 0 : i32
    return %c0_i32, %c0_i32_0 : i32, i32
  }
  func.func @transform_6(%arg0: i32) -> (i32, i32) {
    %c0_i32 = arith.constant 0 : i32
    %c0_i32_0 = arith.constant 0 : i32
    %c0_i32_1 = arith.constant 0 : i32
    return %c0_i32, %c0_i32_0 : i32, i32
  }
  func.func @transform_7(%arg0: i32) -> (i32, i32) {
    %c0_i32 = arith.constant 0 : i32
    %c0_i32_0 = arith.constant 0 : i32
    return %arg0, %c0_i32 : i32, i32
  }
}

</mosaic_0001>

<llo_original>
// kernel: tpu_custom_call.1
$region0: #{tpu_custom_call.1}
  #allocation0 [shape = 'u32[]', space=smem, size = 0x4, offset = 0x4, fixed_abs, tag = 'smem constant byte address 0x4 - core index']
  #allocation1 [shape = 'u32[144,128]{1,0:T(1,128)}', space=vmem, size = 0x12000, scoped, tag = 'internal scratch']
  #allocation2 [shape = 'f32[1,1]{1,0:T(1,128)S(6)}', space=smem, size = 0x200, scoped, tag = 'scoped memory for tpu_custom_call.1']
  %s0 = inlined_call_operand.vmem [shape: f32[8,80], index: 0, kind: input, shape index: {}]
  %s1 = inlined_call_operand.vmem [shape: f32[80,240], index: 1, kind: input, shape index: {}]
  %s2 = inlined_call_operand.vmem [shape: f32[1,240], index: 2, kind: input, shape index: {}]
  %s3 = inlined_call_operand.vmem [shape: f32[240,40], index: 3, kind: input, shape index: {}]
  %s4 = inlined_call_operand.vmem [shape: f32[1,40], index: 4, kind: input, shape index: {}]
  %s5 = inlined_call_operand.vmem [shape: f32[40,4], index: 5, kind: input, shape index: {}]
  %s6 = inlined_call_operand.<no memory space> [shape: f32[1,1], index: 6, kind: input, shape index: {}]
  %s7 = inlined_call_operand.vmem [shape: f32[8,4], index: 7, kind: output, shape index: {}]
  %s8 = sld [smem:[#allocation0]]
  $region38: #{tpu_custom_call.1} parent=0
    _
  %s10 = ssub.s32 1, %s8
  %s11 = scalar_select 0, %s10, %s8
  %12 = sst [smem:[#allocation2]] %s6
  // Predicated region
  $region2: #{tpu_custom_call.1} parent=0 // pred_check
    _
  $region3: #{tpu_custom_call.1} parent=0 // pred_check_branch
    %14 = sbr.rel (0) target = $region5
  $region4: #{tpu_custom_call.1} parent=0 // pred_region
    _
  $region5: #{tpu_custom_call.1} parent=0 // pred_fallthru
    _
  // Predicated region
  $region6: #{tpu_custom_call.1} parent=0 // pred_check
    _
  $region7: #{tpu_custom_call.1} parent=0 // pred_check_branch
    %16 = sbr.rel (0) target = $region9
  $region8: #{tpu_custom_call.1} parent=0 // pred_region
    _
  $region9: #{tpu_custom_call.1} parent=0 // pred_fallthru
    _
  // Predicated region
  $region10: #{tpu_custom_call.1} parent=0 // pred_check
    _
  $region11: #{tpu_custom_call.1} parent=0 // pred_check_branch
    %18 = sbr.rel (0) target = $region13
  $region12: #{tpu_custom_call.1} parent=0 // pred_region
    _
  $region13: #{tpu_custom_call.1} parent=0 // pred_fallthru
    _
  // Predicated region
  $region14: #{tpu_custom_call.1} parent=0 // pred_check
    _
  $region15: #{tpu_custom_call.1} parent=0 // pred_check_branch
    %20 = sbr.rel (0) target = $region17
  $region16: #{tpu_custom_call.1} parent=0 // pred_region
    _
  $region17: #{tpu_custom_call.1} parent=0 // pred_fallthru
    _
  // Predicated region
  $region18: #{tpu_custom_call.1} parent=0 // pred_check
    _
  $region19: #{tpu_custom_call.1} parent=0 // pred_check_branch
    %22 = sbr.rel (0) target = $region21
  $region20: #{tpu_custom_call.1} parent=0 // pred_region
    _
  $region21: #{tpu_custom_call.1} parent=0 // pred_fallthru
    _
  // Predicated region
  $region22: #{tpu_custom_call.1} parent=0 // pred_check
    _
  $region23: #{tpu_custom_call.1} parent=0 // pred_check_branch
    %24 = sbr.rel (0) target = $region25
  $region24: #{tpu_custom_call.1} parent=0 // pred_region
    _
  $region25: #{tpu_custom_call.1} parent=0 // pred_fallthru
    _
  // Predicated region
  $region26: #{tpu_custom_call.1} parent=0 // pred_check
    _
  $region27: #{tpu_custom_call.1} parent=0 // pred_check_branch
    %26 = sbr.rel (0) target = $region29
  $region28: #{tpu_custom_call.1} parent=0 // pred_region
    _
  $region29: #{tpu_custom_call.1} parent=0 // pred_fallthru
    _
  %v27 = vld [vmem:[%s0] sm:$0xff]
  %v28 = vld [vmem:[%s1] sm:$0xff]
  %v29 = vld [vmem:[%s1 + $0x8] sm:$0xff]
  %v30 = vld [vmem:[%s1 + $0x10] sm:$0xff]
  %v31 = vld [vmem:[%s1 + $0x18] sm:$0xff]
  %v32 = vld [vmem:[%s1 + $0x20] sm:$0xff]
  %v33 = vld [vmem:[%s1 + $0x28] sm:$0xff]
  %v34 = vld [vmem:[%s1 + $0x30] sm:$0xff]
  %v35 = vld [vmem:[%s1 + $0x38] sm:$0xff]
  %v36 = vld [vmem:[%s1 + $0x40] sm:$0xff]
  %v37 = vld [vmem:[%s1 + $0x48] sm:$0xff]
  %v38 = vld [vmem:[%s1 + $0x50] sm:$0xff]
  %v39 = vld [vmem:[%s1 + $0x58] sm:$0xff]
  %v40 = vld [vmem:[%s1 + $0x60] sm:$0xff]
  %v41 = vld [vmem:[%s1 + $0x68] sm:$0xff]
  %v42 = vld [vmem:[%s1 + $0x70] sm:$0xff]
  %v43 = vld [vmem:[%s1 + $0x78] sm:$0xff]
  %v44 = vld [vmem:[%s1 + $0x80] sm:$0xff]
  %v45 = vld [vmem:[%s1 + $0x88] sm:$0xff]
  %v46 = vld [vmem:[%s1 + $0x90] sm:$0xff]
  %v47 = vld [vmem:[%s1 + $0x98] sm:$0xff]
  %v48 = vld [vmem:[%s2] sm:$0x3]
  %v50 = vlaneseq
  %v51 = vshrl.u32 %v50, 7
  %v52 = vsub.s32 0, %v51
  %v53 = vrot.slane %v48, %v52
  %v54 = vlaneseq
  %v55 = vshrl.u32 %v54, 7
  %v56 = vsub.s32 1, %v55
  %v57 = vrot.slane %v48, %v56
  %vm60 = vcmask 654336
  %v62 = vsel %vm60, %v27, 0
  %64 = vmatprep.subr.mxu0 0.0
  %65 = vmatpush1.msra.mxu0 0.0
  %66 = vmatprep.subr.mxu0 0.0
  %67 = vmatpush1.msra.mxu0 0.0
  %68 = vmatprep.subr.mxu0 0.0
  %69 = vmatpush1.msra.mxu0 0.0
  %70 = vmatprep.subr.mxu0 0.0
  %71 = vmatpush1.msra.mxu0 0.0
  %72 = vmatprep.subr.mxu0 0.0
  %73 = vmatpush1.msra.mxu0 0.0
  %74 = vmatprep.subr.mxu0 0.0
  %75 = vmatpush1.msra.mxu0 0.0
  %76 = vmatprep.subr.mxu0 %v47
  %77 = vmatpush1.msra.mxu0 %v46
  %78 = vmatprep.subr.mxu0 %v45
  %79 = vmatpush1.msra.mxu0 %v44
  %80 = vmatprep.subr.mxu0 %v43
  %81 = vmatpush1.msra.mxu0 %v42
  %82 = vmatprep.subr.mxu0 %v41
  %83 = vmatpush1.msra.mxu0 %v40
  %84 = vmatprep.subr.mxu0 %v39
  %85 = vmatpush1.msra.mxu0 %v38
  %86 = vmatprep.subr.mxu0 %v37
  %87 = vmatpush1.msra.mxu0 %v36
  %88 = vmatprep.subr.mxu0 %v35
  %89 = vmatpush1.msra.mxu0 %v34
  %90 = vmatprep.subr.mxu0 %v33
  %91 = vmatpush1.msra.mxu0 %v32
  %92 = vmatprep.subr.mxu0 %v31
  %93 = vmatpush1.msra.mxu0 %v30
  %94 = vmatprep.subr.mxu0 %v29
  %95 = vmatpush1.msra.mxu0 %v28
  %96 = vmatprep.subr.mxu0 0.0
  %97 = vmatpush2.msra.mxu0 0.0
  %98 = vmatprep.subr.mxu0 0.0
  %99 = vmatpush2.msra.mxu0 0.0
  %100 = vmatprep.subr.mxu0 0.0
  %101 = vmatpush2.msra.mxu0 0.0
  %102 = vmatprep.subr.mxu0 0.0
  %103 = vmatpush2.msra.mxu0 0.0
  %104 = vmatprep.subr.mxu0 0.0
  %105 = vmatpush2.msra.mxu0 0.0
  %106 = vmatprep.subr.mxu0 0.0
  %107 = vmatpush2.msra.mxu0 0.0
  %108 = vmatprep.subr.mxu0 0.0
  %109 = vmatpush2.msra.mxu0 0.0
  %110 = vmatprep.subr.mxu0 0.0
  %111 = vmatpush2.msra.mxu0 0.0
  %112 = vmatprep.subr.mxu0 0.0
  %113 = vmatpush2.msra.mxu0 0.0
  %114 = vmatprep.subr.mxu0 0.0
  %115 = vmatpush2.msra.mxu0 0.0
  %116 = vmatprep.subr.mxu0 0.0
  %117 = vmatpush2.msra.mxu0 0.0
  %118 = vmatprep.subr.mxu0 0.0
  %119 = vmatpush2.msra.mxu0 0.0
  %120 = vmatprep.subr.mxu0 0.0
  %121 = vmatpush2.msra.mxu0 0.0
  %122 = vmatprep.subr.mxu0 0.0
  %123 = vmatpush2.msra.mxu0 0.0
  %124 = vmatprep.subr.mxu0 0.0
  %125 = vmatpush2.msra.mxu0 0.0
  %126 = vmatprep.subr.mxu0 0.0
  %127 = vmatpush2.msra.mxu0 0.0
  %128 = vmatprep.mubr.f32.mxu0 0.0
  %129 = vmatmul.mubr.f32.gmra.mxu0 %v62
  %v130 = vpop.f32.mrf.mxu0
  %v131 = vadd.f32 %v53, %v130
  %v132 = vpop.f32.mrf.mxu0
  %v133 = vadd.f32 %v57, %v132
  %134 = vdwg.mxu0
  %vm135 = vcmp.ge.f32.partialorder %v131, 0.0
  %vm136 = vcmp.ge.f32.partialorder %v133, 0.0
  %v137 = vmul.f32 %v131, 0.2
  %v138 = vmul.f32 %v133, 0.2
  %v139 = vsel %vm135, %v131, %v137
  %v140 = vsel %vm136, %v133, %v138
  %v141 = vld [vmem:[%s3] sm:$0xff]
  %v142 = vld [vmem:[%s3 + $0x8] sm:$0xff]
  %v143 = vld [vmem:[%s3 + $0x10] sm:$0xff]
  %v144 = vld [vmem:[%s3 + $0x18] sm:$0xff]
  %v145 = vld [vmem:[%s3 + $0x20] sm:$0xff]
  %v146 = vld [vmem:[%s3 + $0x28] sm:$0xff]
  %v147 = vld [vmem:[%s3 + $0x30] sm:$0xff]
  %v148 = vld [vmem:[%s3 + $0x38] sm:$0xff]
  %v149 = vld [vmem:[%s3 + $0x40] sm:$0xff]
  %v150 = vld [vmem:[%s3 + $0x48] sm:$0xff]
  %v151 = vld [vmem:[%s3 + $0x50] sm:$0xff]
  %v152 = vld [vmem:[%s3 + $0x58] sm:$0xff]
  %v153 = vld [vmem:[%s3 + $0x60] sm:$0xff]
  %v154 = vld [vmem:[%s3 + $0x68] sm:$0xff]
  %v155 = vld [vmem:[%s3 + $0x70] sm:$0xff]
  %v156 = vld [vmem:[%s3 + $0x78] sm:$0xff]
  %v157 = vld [vmem:[%s3 + $0x80] sm:$0xff]
  %v158 = vld [vmem:[%s3 + $0x88] sm:$0xff]
  %v159 = vld [vmem:[%s3 + $0x90] sm:$0xff]
  %v160 = vld [vmem:[%s3 + $0x98] sm:$0xff]
  %v161 = vld [vmem:[%s3 + $0xa0] sm:$0xff]
  %v162 = vld [vmem:[%s3 + $0xa8] sm:$0xff]
  %v163 = vld [vmem:[%s3 + $0xb0] sm:$0xff]
  %v164 = vld [vmem:[%s3 + $0xb8] sm:$0xff]
  %v165 = vld [vmem:[%s3 + $0xc0] sm:$0xff]
  %v166 = vld [vmem:[%s3 + $0xc8] sm:$0xff]
  %v167 = vld [vmem:[%s3 + $0xd0] sm:$0xff]
  %v168 = vld [vmem:[%s3 + $0xd8] sm:$0xff]
  %v169 = vld [vmem:[%s3 + $0xe0] sm:$0xff]
  %v170 = vld [vmem:[%s3 + $0xe8] sm:$0xff]
  %v171 = vld [vmem:[%s4] sm:$0x1]
  %v173 = vlaneseq
  %v174 = vshrl.u32 %v173, 7
  %v175 = vsub.s32 0, %v174
  %v176 = vrot.slane %v171, %v175
  %vm178 = vcmask 916480
  %v180 = vsel %vm178, %v140, 0
  %182 = vmatprep.subr.mxu0 0.0
  %183 = vmatpush1.msra.mxu0 %v156
  %184 = vmatprep.subr.mxu0 0.0
  %185 = vmatpush1.msra.mxu0 %v155
  %186 = vmatprep.subr.mxu0 0.0
  %187 = vmatpush1.msra.mxu0 %v154
  %188 = vmatprep.subr.mxu0 0.0
  %189 = vmatpush1.msra.mxu0 %v153
  %190 = vmatprep.subr.mxu0 0.0
  %191 = vmatpush1.msra.mxu0 %v152
  %192 = vmatprep.subr.mxu0 0.0
  %193 = vmatpush1.msra.mxu0 %v151
  %194 = vmatprep.subr.mxu0 0.0
  %195 = vmatpush1.msra.mxu0 %v150
  %196 = vmatprep.subr.mxu0 0.0
  %197 = vmatpush1.msra.mxu0 %v149
  %198 = vmatprep.subr.mxu0 0.0
  %199 = vmatpush1.msra.mxu0 %v148
  %200 = vmatprep.subr.mxu0 0.0
  %201 = vmatpush1.msra.mxu0 %v147
  %202 = vmatprep.subr.mxu0 0.0
  %203 = vmatpush1.msra.mxu0 %v146
  %204 = vmatprep.subr.mxu0 0.0
  %205 = vmatpush1.msra.mxu0 %v145
  %206 = vmatprep.subr.mxu0 0.0
  %207 = vmatpush1.msra.mxu0 %v144
  %208 = vmatprep.subr.mxu0 0.0
  %209 = vmatpush1.msra.mxu0 %v143
  %210 = vmatprep.subr.mxu0 0.0
  %211 = vmatpush1.msra.mxu0 %v142
  %212 = vmatprep.subr.mxu0 0.0
  %213 = vmatpush1.msra.mxu0 %v141
  %214 = vmatprep.subr.mxu0 0.0
  %215 = vmatpush2.msra.mxu0 0.0
  %216 = vmatprep.subr.mxu0 0.0
  %217 = vmatpush2.msra.mxu0 0.0
  %218 = vmatprep.subr.mxu0 0.0
  %219 = vmatpush2.msra.mxu0 %v170
  %220 = vmatprep.subr.mxu0 0.0
  %221 = vmatpush2.msra.mxu0 %v169
  %222 = vmatprep.subr.mxu0 0.0
  %223 = vmatpush2.msra.mxu0 %v168
  %224 = vmatprep.subr.mxu0 0.0
  %225 = vmatpush2.msra.mxu0 %v167
  %226 = vmatprep.subr.mxu0 0.0
  %227 = vmatpush2.msra.mxu0 %v166
  %228 = vmatprep.subr.mxu0 0.0
  %229 = vmatpush2.msra.mxu0 %v165
  %230 = vmatprep.subr.mxu0 0.0
  %231 = vmatpush2.msra.mxu0 %v164
  %232 = vmatprep.subr.mxu0 0.0
  %233 = vmatpush2.msra.mxu0 %v163
  %234 = vmatprep.subr.mxu0 0.0
  %235 = vmatpush2.msra.mxu0 %v162
  %236 = vmatprep.subr.mxu0 0.0
  %237 = vmatpush2.msra.mxu0 %v161
  %238 = vmatprep.subr.mxu0 0.0
  %239 = vmatpush2.msra.mxu0 %v160
  %240 = vmatprep.subr.mxu0 0.0
  %241 = vmatpush2.msra.mxu0 %v159
  %242 = vmatprep.subr.mxu0 0.0
  %243 = vmatpush2.msra.mxu0 %v158
  %244 = vmatprep.subr.mxu0 0.0
  %245 = vmatpush2.msra.mxu0 %v157
  %246 = vmatprep.mubr.f32.mxu0 %v180
  %247 = vmatmul.mubr.f32.gmra.mxu0 %v139
  %v248 = vpop.f32.mrf.mxu0
  %v249 = vadd.f32 %v176, %v248
  %v250 = vpop.f32.mrf.mxu0
  %251 = vdwg.mxu0
  %vm252 = vcmp.ge.f32.partialorder %v249, 0.0
  %v253 = vmul.f32 %v249, 0.2
  %v254 = vsel %vm252, %v249, %v253
  %v255 = vld [vmem:[%s5] sm:$0xff]
  %v256 = vld [vmem:[%s5 + $0x8] sm:$0xff]
  %v257 = vld [vmem:[%s5 + $0x10] sm:$0xff]
  %v258 = vld [vmem:[%s5 + $0x18] sm:$0xff]
  %v259 = vld [vmem:[%s5 + $0x20] sm:$0xff]
  %s260 = sld [smem:[#allocation2]]
  %v261 = vstv %s260
  %vm262 = vcmask 326656
  %v264 = vsel %vm262, %v254, 0
  %266 = vmatprep.subr.mxu0 0.0
  %267 = vmatpush1.msra.mxu0 0.0
  %268 = vmatprep.subr.mxu0 0.0
  %269 = vmatpush1.msra.mxu0 0.0
  %270 = vmatprep.subr.mxu0 0.0
  %271 = vmatpush1.msra.mxu0 0.0
  %272 = vmatprep.subr.mxu0 0.0
  %273 = vmatpush1.msra.mxu0 0.0
  %274 = vmatprep.subr.mxu0 0.0
  %275 = vmatpush1.msra.mxu0 0.0
  %276 = vmatprep.subr.mxu0 0.0
  %277 = vmatpush1.msra.mxu0 0.0
  %278 = vmatprep.subr.mxu0 0.0
  %279 = vmatpush1.msra.mxu0 0.0
  %280 = vmatprep.subr.mxu0 0.0
  %281 = vmatpush1.msra.mxu0 0.0
  %282 = vmatprep.subr.mxu0 0.0
  %283 = vmatpush1.msra.mxu0 0.0
  %284 = vmatprep.subr.mxu0 0.0
  %285 = vmatpush1.msra.mxu0 0.0
  %286 = vmatprep.subr.mxu0 0.0
  %287 = vmatpush1.msra.mxu0 0.0
  %288 = vmatprep.subr.mxu0 0.0
  %289 = vmatpush1.msra.mxu0 %v259
  %290 = vmatprep.subr.mxu0 0.0
  %291 = vmatpush1.msra.mxu0 %v258
  %292 = vmatprep.subr.mxu0 0.0
  %293 = vmatpush1.msra.mxu0 %v257
  %294 = vmatprep.subr.mxu0 0.0
  %295 = vmatpush1.msra.mxu0 %v256
  %296 = vmatprep.subr.mxu0 0.0
  %297 = vmatpush1.msra.mxu0 %v255
  %298 = vmatprep.subr.mxu0 0.0
  %299 = vmatpush2.msra.mxu0 0.0
  %300 = vmatprep.subr.mxu0 0.0
  %301 = vmatpush2.msra.mxu0 0.0
  %302 = vmatprep.subr.mxu0 0.0
  %303 = vmatpush2.msra.mxu0 0.0
  %304 = vmatprep.subr.mxu0 0.0
  %305 = vmatpush2.msra.mxu0 0.0
  %306 = vmatprep.subr.mxu0 0.0
  %307 = vmatpush2.msra.mxu0 0.0
  %308 = vmatprep.subr.mxu0 0.0
  %309 = vmatpush2.msra.mxu0 0.0
  %310 = vmatprep.subr.mxu0 0.0
  %311 = vmatpush2.msra.mxu0 0.0
  %312 = vmatprep.subr.mxu0 0.0
  %313 = vmatpush2.msra.mxu0 0.0
  %314 = vmatprep.subr.mxu0 0.0
  %315 = vmatpush2.msra.mxu0 0.0
  %316 = vmatprep.subr.mxu0 0.0
  %317 = vmatpush2.msra.mxu0 0.0
  %318 = vmatprep.subr.mxu0 0.0
  %319 = vmatpush2.msra.mxu0 0.0
  %320 = vmatprep.subr.mxu0 0.0
  %321 = vmatpush2.msra.mxu0 0.0
  %322 = vmatprep.subr.mxu0 0.0
  %323 = vmatpush2.msra.mxu0 0.0
  %324 = vmatprep.subr.mxu0 0.0
  %325 = vmatpush2.msra.mxu0 0.0
  %326 = vmatprep.subr.mxu0 0.0
  %327 = vmatpush2.msra.mxu0 0.0
  %328 = vmatprep.subr.mxu0 0.0
  %329 = vmatpush2.msra.mxu0 0.0
  %330 = vmatprep.mubr.f32.mxu0 0.0
  %331 = vmatmul.mubr.f32.gmra.mxu0 %v264
  %v332 = vpop.f32.mrf.mxu0
  %v333 = vadd.f32 %v261, %v332
  %v334 = vpop.f32.mrf.mxu0
  %335 = vdwg.mxu0
  %vm336 = vcmask 31744
  %337 = vst.msk [vmem:[%s7] sm:$0xff] %vm336, %v333
  // Predicated region
  $region30: #{tpu_custom_call.1} parent=0 // pred_check
    _
  $region31: #{tpu_custom_call.1} parent=0 // pred_check_branch
    %339 = sbr.rel (0) target = $region33
  $region32: #{tpu_custom_call.1} parent=0 // pred_region
    _
  $region33: #{tpu_custom_call.1} parent=0 // pred_fallthru
    _
  // Predicated region
  $region34: #{tpu_custom_call.1} parent=0 // pred_check
    _
  $region35: #{tpu_custom_call.1} parent=0 // pred_check_branch
    %341 = sbr.rel (0) target = $region37
  $region36: #{tpu_custom_call.1} parent=0 // pred_region
    _
  $region37: #{tpu_custom_call.1} parent=0 // pred_fallthru
    _

</llo_original>
